<compile_context>
chip_gen: v7x
topology: tpu7x:2x2x1
jax: 0.10.0
libtpu: 0.0.40
codegen_flags: <defaults>
</compile_context>

<pallas_src>
import jax
import jax.numpy as jnp
import numpy as np
from jax import lax
from jax.experimental import pallas as pl
from jax.experimental.pallas import tpu as pltpu

LEAKY_SLOPE = 0.1
BN_EPS = 1e-5


def _make_kernel(H, W, LB, Cin):
    # LB = lanes per grid step = (images per step) * H * W

    def kernel(x_ref, w1_ref, t1_ref, w2_ref, t2_ref, mask_ref, o_ref):
        # x_ref   : (Cin, LB)      f32   channels on sublanes, batch*pixels on lanes
        # w1_ref  : (Cres, Cin)    f32   block-diag 1x1 grouped-conv weight (BN folded)
        # t1_ref  : (Cres, 1)      f32   folded conv-bias + BN shift
        # w2_ref  : (Cin, 9*Cres)  bf16  3x3 conv weight in im2col layout (BN folded)
        # t2_ref  : (Cin, 1)       f32
        # mask_ref: (9, 1, LB)     f32   precomputed zero-padding boundary masks
        # o_ref   : (Cin, LB)      f32
        x = x_ref[...]                                          # (Cin, LB) f32

        # ---- layer1: 1x1 grouped conv + folded BN + LeakyReLU ------------------
        # M=Cres, K=Cin is tiny; unrolled VPU multiply-adds avoid the MXU
        # push -> systolic -> pop latency of a <2%-occupancy matmul.
        w1 = w1_ref[...]                                        # (Cres, Cin) f32
        y = w1[:, 0:1] * x[0:1, :] + t1_ref[...]                # (Cres, LB)
        for i in range(1, Cin):
            y = y + w1[:, i:i + 1] * x[i:i + 1, :]
        mid = jnp.where(y > 0, y, LEAKY_SLOPE * y)              # (Cres, LB) f32

        # ---- layer2: 3x3 conv (pad=1, stride=1) as one fused im2col matmul -----
        # Taps are register-resident: lane rolls (XLU) times host-precomputed
        # boundary masks (one VPU mul per tap).  Rolls may wrap across image
        # boundaries on the fused lane axis -- the masks zero exactly those lanes.
        taps = []
        t = 0
        for dy in range(3):
            for dx in range(3):
                dr, dc = dy - 1, dx - 1
                s = dr * W + dc                                 # flat source offset
                if s == 0:
                    tap = mid
                else:
                    tap = pltpu.roll(mid, shift=(-s) % LB, axis=1) * mask_ref[t]
                taps.append(tap.astype(jnp.bfloat16))           # cast per-tap
                t += 1
        im2col = jnp.concatenate(taps, axis=0)                  # (9*Cres, LB) bf16

        z = jnp.dot(w2_ref[...], im2col,
                    preferred_element_type=jnp.float32) + t2_ref[...]   # (Cin, LB)
        z = jnp.where(z > 0, z, LEAKY_SLOPE * z)

        # ---- residual add ----
        o_ref[...] = (z + x).astype(o_ref.dtype)

    return kernel


def _images_per_step(N, HW, min_lanes=2048):
    # Only keep >=2 grid steps (so both v7x TCs get work) when each step still
    # carries >= min_lanes of output; otherwise fuse the whole batch into one step.
    for B in range(1, N):
        if N % B == 0 and B * HW >= min_lanes and (N // B) >= 2:
            return B
    return N


def _boundary_masks(H, W, B):
    # (9, 1, B*HW) f32 validity masks for the 9 conv taps (zero padding), the
    # per-image pattern tiled B times along the fused lane axis.
    HW = H * W
    q = np.arange(B * HW) % HW
    row, col = q // W, q % W
    m = []
    for dy in range(3):
        for dx in range(3):
            dr, dc = dy - 1, dx - 1
            valid = ((row + dr >= 0) & (row + dr < H) &
                     (col + dc >= 0) & (col + dc < W))
            m.append(valid.astype(np.float32))
    return jnp.asarray(np.stack(m)[:, None, :])                 # (9, 1, B*HW)


def residual_block(x_nchw, params):
    N, Cin, H, W = x_nchw.shape
    HW = H * W
    w1, t1 = params["w1_eff"], params["shift1"]
    w2, t2 = params["w2_mat"], params["shift2"]
    Cres = w1.shape[0]

    B = _images_per_step(N, HW)
    LB = B * HW
    steps = N // B
    masks = _boundary_masks(H, W, B)

    # channels on sublanes, (batch * pixels) on the lane axis -> lane-dense blocks
    x2 = jnp.transpose(x_nchw, (1, 0, 2, 3)).reshape(Cin, N * HW)

    full2d = lambda n: (0, 0)
    out = pl.pallas_call(
        _make_kernel(H, W, LB, Cin),
        out_shape=jax.ShapeDtypeStruct((Cin, N * HW), x2.dtype),
        grid_spec=pltpu.PrefetchScalarGridSpec(
            num_scalar_prefetch=0,
            grid=(steps,),
            in_specs=[
                pl.BlockSpec((Cin, LB), lambda n: (0, n)),
                pl.BlockSpec((Cres, Cin), full2d),
                pl.BlockSpec((Cres, 1), full2d),
                pl.BlockSpec((Cin, 9 * Cres), full2d),
                pl.BlockSpec((Cin, 1), full2d),
                pl.BlockSpec((9, 1, LB), lambda n: (0, 0, 0)),
            ],
            out_specs=pl.BlockSpec((Cin, LB), lambda n: (0, n)),
        ),
        compiler_params=pltpu.CompilerParams(
            dimension_semantics=("parallel",),
        ),
    )(x2, w1, t1, w2, t2, masks)

    return jnp.transpose(out.reshape(Cin, N, H, W), (1, 0, 2, 3))


def make_params(key, in_ch, groups):
    res_ch = in_ch // 2
    cin_g, cres_g = in_ch // groups, res_ch // groups
    ks = jax.random.split(key, 12)

    # conv1 (grouped 1x1): PyTorch weight shape (res_ch, in_ch/groups, 1, 1)
    w1_grouped = jax.random.normal(ks[0], (res_ch, cin_g, 1, 1), jnp.float32) * 0.2
    b1 = jax.random.normal(ks[1], (res_ch,), jnp.float32) * 0.1
    g1 = 1.0 + 0.1 * jax.random.normal(ks[2], (res_ch,), jnp.float32)
    be1 = 0.1 * jax.random.normal(ks[3], (res_ch,), jnp.float32)
    m1 = 0.1 * jax.random.normal(ks[4], (res_ch,), jnp.float32)
    v1 = 1.0 + 0.1 * jax.nn.softplus(jax.random.normal(ks[5], (res_ch,), jnp.float32))

    # conv2 (3x3): PyTorch weight shape (in_ch, res_ch, 3, 3)
    w2 = jax.random.normal(ks[6], (in_ch, res_ch, 3, 3), jnp.float32) * 0.2
    b2 = jax.random.normal(ks[7], (in_ch,), jnp.float32) * 0.1
    g2 = 1.0 + 0.1 * jax.random.normal(ks[8], (in_ch,), jnp.float32)
    be2 = 0.1 * jax.random.normal(ks[9], (in_ch,), jnp.float32)
    m2 = 0.1 * jax.random.normal(ks[10], (in_ch,), jnp.float32)
    v2 = 1.0 + 0.1 * jax.nn.softplus(jax.random.normal(ks[11], (in_ch,), jnp.float32))

    # grouped 1x1 conv == dense matmul with a block-diagonal (Cres, Cin) weight
    w1_full = jnp.zeros((res_ch, in_ch), jnp.float32)
    for g in range(groups):
        blk = w1_grouped[g * cres_g:(g + 1) * cres_g, :, 0, 0]      # (cres_g, cin_g)
        w1_full = w1_full.at[g * cres_g:(g + 1) * cres_g,
                             g * cin_g:(g + 1) * cin_g].set(blk)

    # fold conv bias + eval-mode BN into a per-out-channel weight scale + one shift
    s1 = g1 / jnp.sqrt(v1 + BN_EPS)
    shift1 = (b1 - m1) * s1 + be1
    s2 = g2 / jnp.sqrt(v2 + BN_EPS)
    shift2 = (b2 - m2) * s2 + be2

    w1_eff = w1_full * s1[:, None]                                  # (Cres, Cin) f32

    # (O,I,3,3) -> fold scale -> (O,3,3,I) -> (O, 9*I) matching the kernel's
    # im2col row order ((dy*3 + dx)*Cres + i)
    w2_eff = w2 * s2[:, None, None, None]
    w2_mat = jnp.transpose(w2_eff, (0, 2, 3, 1)).reshape(in_ch, 9 * res_ch)
    w2_mat = w2_mat.astype(jnp.bfloat16)

    kernel_params = {
        "w1_eff": w1_eff,
        "shift1": shift1.reshape(res_ch, 1),
        "w2_mat": w2_mat,
        "shift2": shift2.reshape(in_ch, 1),
    }
    ref_params = (w1_grouped, b1, g1, be1, m1, v1, w2, b2, g2, be2, m2, v2)
    return kernel_params, ref_params


def ref_forward(x, ref_params, groups):
    (w1g, b1, g1, be1, m1, v1, w2, b2, g2, be2, m2, v2) = ref_params

    def bn(z, g, be, m, v):
        return (z - m[None, :, None, None]) / jnp.sqrt(v[None, :, None, None] + BN_EPS) \
               * g[None, :, None, None] + be[None, :, None, None]

    y = jax.lax.conv_general_dilated(
        x, w1g, (1, 1), "VALID",
        dimension_numbers=("NCHW", "OIHW", "NCHW"),
        feature_group_count=groups) + b1[None, :, None, None]
    y = bn(y, g1, be1, m1, v1)
    y = jnp.where(y > 0, y, LEAKY_SLOPE * y)

    z = jax.lax.conv_general_dilated(
        y, w2, (1, 1), ((1, 1), (1, 1)),
        dimension_numbers=("NCHW", "OIHW", "NCHW")) + b2[None, :, None, None]
    z = bn(z, g2, be2, m2, v2)
    z = jnp.where(z > 0, z, LEAKY_SLOPE * z)
    return z + x


if __name__ == "__main__":
    N, in_ch, H, W = 2, 4, 16, 16
    groups = 2

    key = jax.random.PRNGKey(0)
    k_x, k_p = jax.random.split(key)
    x = jax.random.normal(k_x, (N, in_ch, H, W), jnp.float32)

    kernel_params, ref_params = make_params(k_p, in_ch, groups)

    out = jax.block_until_ready(residual_block(x, kernel_params))
    ref = ref_forward(x, ref_params, groups)

    # Tolerance is loosened vs. a pure-f32 path because the 3x3 conv matmul
    # uses bf16 MXU operands (f32 accumulation); structural/indexing errors
    # would be O(1), far above this.
    np.testing.assert_allclose(np.asarray(out), np.asarray(ref), rtol=3e-2, atol=3e-2)

    print("KERNEL_OK")
</pallas_src>

<mosaic_0001>
module attributes {stable_mosaic.version = 11 : i64} {
  func.func @kernel(%arg0: i32, %arg1: memref<4x512xf32, #tpu.memory_space<vmem>>, %arg2: memref<2x4xf32, #tpu.memory_space<vmem>>, %arg3: memref<2x1xf32, #tpu.memory_space<vmem>>, %arg4: memref<4x18xbf16, #tpu.memory_space<vmem>>, %arg5: memref<4x1xf32, #tpu.memory_space<vmem>>, %arg6: memref<9x1x512xf32, #tpu.memory_space<vmem>>, %arg7: memref<4x512xf32, #tpu.memory_space<vmem>>) attributes {dimension_semantics = [#tpu.dimension_semantics<parallel>], iteration_bounds = array<i64: 1>, scalar_prefetch = 0 : i64, scratch_operands = 0 : i64, tpu.core_type = #tpu.core_type<tc>, window_params = [{transform_indices = @transform_0, window_bounds = array<i64: 4, 512>}, {pipeline_mode = #tpu.pipeline_mode<synchronous>, transform_indices = @transform_1, window_bounds = array<i64: 2, 4>}, {pipeline_mode = #tpu.pipeline_mode<synchronous>, transform_indices = @transform_2, window_bounds = array<i64: 2, 1>}, {pipeline_mode = #tpu.pipeline_mode<synchronous>, transform_indices = @transform_3, window_bounds = array<i64: 4, 18>}, {pipeline_mode = #tpu.pipeline_mode<synchronous>, transform_indices = @transform_4, window_bounds = array<i64: 4, 1>}, {pipeline_mode = #tpu.pipeline_mode<synchronous>, transform_indices = @transform_5, window_bounds = array<i64: 9, 1, 512>}, {transform_indices = @transform_6, window_bounds = array<i64: 4, 512>}]} {
    %c0 = arith.constant 0 : index
    %c0_0 = arith.constant 0 : index
    %0 = vector.load %arg1[%c0, %c0_0] : memref<4x512xf32, #tpu.memory_space<vmem>>, vector<4x512xf32>
    %c0_1 = arith.constant 0 : index
    %c0_2 = arith.constant 0 : index
    %1 = vector.load %arg2[%c0_1, %c0_2] : memref<2x4xf32, #tpu.memory_space<vmem>>, vector<2x4xf32>
    %2 = vector.extract_strided_slice %1 {offsets = [0, 0], sizes = [2, 1], strides = [1, 1]} : vector<2x4xf32> to vector<2x1xf32>
    %3 = vector.extract_strided_slice %0 {offsets = [0, 0], sizes = [1, 512], strides = [1, 1]} : vector<4x512xf32> to vector<1x512xf32>
    %4 = vector.broadcast %2 : vector<2x1xf32> to vector<2x512xf32>
    %5 = vector.broadcast %3 : vector<1x512xf32> to vector<2x512xf32>
    %6 = arith.mulf %4, %5 : vector<2x512xf32>
    %c0_3 = arith.constant 0 : index
    %c0_4 = arith.constant 0 : index
    %7 = vector.load %arg3[%c0_3, %c0_4] : memref<2x1xf32, #tpu.memory_space<vmem>>, vector<2x1xf32>
    %8 = vector.broadcast %7 : vector<2x1xf32> to vector<2x512xf32>
    %9 = arith.addf %6, %8 : vector<2x512xf32>
    %10 = vector.extract_strided_slice %1 {offsets = [0, 1], sizes = [2, 1], strides = [1, 1]} : vector<2x4xf32> to vector<2x1xf32>
    %11 = vector.extract_strided_slice %0 {offsets = [1, 0], sizes = [1, 512], strides = [1, 1]} : vector<4x512xf32> to vector<1x512xf32>
    %12 = vector.broadcast %10 : vector<2x1xf32> to vector<2x512xf32>
    %13 = vector.broadcast %11 : vector<1x512xf32> to vector<2x512xf32>
    %14 = arith.mulf %12, %13 : vector<2x512xf32>
    %15 = arith.addf %9, %14 : vector<2x512xf32>
    %16 = vector.extract_strided_slice %1 {offsets = [0, 2], sizes = [2, 1], strides = [1, 1]} : vector<2x4xf32> to vector<2x1xf32>
    %17 = vector.extract_strided_slice %0 {offsets = [2, 0], sizes = [1, 512], strides = [1, 1]} : vector<4x512xf32> to vector<1x512xf32>
    %18 = vector.broadcast %16 : vector<2x1xf32> to vector<2x512xf32>
    %19 = vector.broadcast %17 : vector<1x512xf32> to vector<2x512xf32>
    %20 = arith.mulf %18, %19 : vector<2x512xf32>
    %21 = arith.addf %15, %20 : vector<2x512xf32>
    %22 = vector.extract_strided_slice %1 {offsets = [0, 3], sizes = [2, 1], strides = [1, 1]} : vector<2x4xf32> to vector<2x1xf32>
    %23 = vector.extract_strided_slice %0 {offsets = [3, 0], sizes = [1, 512], strides = [1, 1]} : vector<4x512xf32> to vector<1x512xf32>
    %24 = vector.broadcast %22 : vector<2x1xf32> to vector<2x512xf32>
    %25 = vector.broadcast %23 : vector<1x512xf32> to vector<2x512xf32>
    %26 = arith.mulf %24, %25 : vector<2x512xf32>
    %27 = arith.addf %21, %26 : vector<2x512xf32>
    %cst = arith.constant 0.000000e+00 : f32
    %28 = vector.broadcast %cst : f32 to vector<2x512xf32>
    %29 = arith.cmpf ogt, %27, %28 : vector<2x512xf32>
    %cst_5 = arith.constant 1.000000e-01 : f32
    %30 = vector.broadcast %cst_5 : f32 to vector<2x512xf32>
    %31 = arith.mulf %30, %27 : vector<2x512xf32>
    %32 = arith.select %29, %27, %31 : vector<2x512xi1>, vector<2x512xf32>
    %c17_i32 = arith.constant 17 : i32
    %33 = tpu.dynamic_rotate %32 by %c17_i32 dim 1 : vector<2x512xf32>, i32 -> vector<2x512xf32>
    %c0_6 = arith.constant 0 : index
    %c0_7 = arith.constant 0 : index
    %c0_8 = arith.constant 0 : index
    %34 = vector.load %arg6[%c0_6, %c0_7, %c0_8] : memref<9x1x512xf32, #tpu.memory_space<vmem>>, vector<1x1x512xf32>
    %35 = vector.shape_cast %34 : vector<1x1x512xf32> to vector<1x512xf32>
    %36 = vector.broadcast %35 : vector<1x512xf32> to vector<2x512xf32>
    %37 = arith.mulf %33, %36 : vector<2x512xf32>
    %38 = arith.truncf %37 : vector<2x512xf32> to vector<2x512xbf16>
    %c16_i32 = arith.constant 16 : i32
    %39 = tpu.dynamic_rotate %32 by %c16_i32 dim 1 : vector<2x512xf32>, i32 -> vector<2x512xf32>
    %c1 = arith.constant 1 : index
    %c0_9 = arith.constant 0 : index
    %c0_10 = arith.constant 0 : index
    %40 = vector.load %arg6[%c1, %c0_9, %c0_10] : memref<9x1x512xf32, #tpu.memory_space<vmem>>, vector<1x1x512xf32>
    %41 = vector.shape_cast %40 : vector<1x1x512xf32> to vector<1x512xf32>
    %42 = vector.broadcast %41 : vector<1x512xf32> to vector<2x512xf32>
    %43 = arith.mulf %39, %42 : vector<2x512xf32>
    %44 = arith.truncf %43 : vector<2x512xf32> to vector<2x512xbf16>
    %c15_i32 = arith.constant 15 : i32
    %45 = tpu.dynamic_rotate %32 by %c15_i32 dim 1 : vector<2x512xf32>, i32 -> vector<2x512xf32>
    %c2 = arith.constant 2 : index
    %c0_11 = arith.constant 0 : index
    %c0_12 = arith.constant 0 : index
    %46 = vector.load %arg6[%c2, %c0_11, %c0_12] : memref<9x1x512xf32, #tpu.memory_space<vmem>>, vector<1x1x512xf32>
    %47 = vector.shape_cast %46 : vector<1x1x512xf32> to vector<1x512xf32>
    %48 = vector.broadcast %47 : vector<1x512xf32> to vector<2x512xf32>
    %49 = arith.mulf %45, %48 : vector<2x512xf32>
    %50 = arith.truncf %49 : vector<2x512xf32> to vector<2x512xbf16>
    %c1_i32 = arith.constant 1 : i32
    %51 = tpu.dynamic_rotate %32 by %c1_i32 dim 1 : vector<2x512xf32>, i32 -> vector<2x512xf32>
    %c3 = arith.constant 3 : index
    %c0_13 = arith.constant 0 : index
    %c0_14 = arith.constant 0 : index
    %52 = vector.load %arg6[%c3, %c0_13, %c0_14] : memref<9x1x512xf32, #tpu.memory_space<vmem>>, vector<1x1x512xf32>
    %53 = vector.shape_cast %52 : vector<1x1x512xf32> to vector<1x512xf32>
    %54 = vector.broadcast %53 : vector<1x512xf32> to vector<2x512xf32>
    %55 = arith.mulf %51, %54 : vector<2x512xf32>
    %56 = arith.truncf %55 : vector<2x512xf32> to vector<2x512xbf16>
    %57 = arith.truncf %32 : vector<2x512xf32> to vector<2x512xbf16>
    %c511_i32 = arith.constant 511 : i32
    %58 = tpu.dynamic_rotate %32 by %c511_i32 dim 1 : vector<2x512xf32>, i32 -> vector<2x512xf32>
    %c5 = arith.constant 5 : index
    %c0_15 = arith.constant 0 : index
    %c0_16 = arith.constant 0 : index
    %59 = vector.load %arg6[%c5, %c0_15, %c0_16] : memref<9x1x512xf32, #tpu.memory_space<vmem>>, vector<1x1x512xf32>
    %60 = vector.shape_cast %59 : vector<1x1x512xf32> to vector<1x512xf32>
    %61 = vector.broadcast %60 : vector<1x512xf32> to vector<2x512xf32>
    %62 = arith.mulf %58, %61 : vector<2x512xf32>
    %63 = arith.truncf %62 : vector<2x512xf32> to vector<2x512xbf16>
    %c497_i32 = arith.constant 497 : i32
    %64 = tpu.dynamic_rotate %32 by %c497_i32 dim 1 : vector<2x512xf32>, i32 -> vector<2x512xf32>
    %c6 = arith.constant 6 : index
    %c0_17 = arith.constant 0 : index
    %c0_18 = arith.constant 0 : index
    %65 = vector.load %arg6[%c6, %c0_17, %c0_18] : memref<9x1x512xf32, #tpu.memory_space<vmem>>, vector<1x1x512xf32>
    %66 = vector.shape_cast %65 : vector<1x1x512xf32> to vector<1x512xf32>
    %67 = vector.broadcast %66 : vector<1x512xf32> to vector<2x512xf32>
    %68 = arith.mulf %64, %67 : vector<2x512xf32>
    %69 = arith.truncf %68 : vector<2x512xf32> to vector<2x512xbf16>
    %c496_i32 = arith.constant 496 : i32
    %70 = tpu.dynamic_rotate %32 by %c496_i32 dim 1 : vector<2x512xf32>, i32 -> vector<2x512xf32>
    %c7 = arith.constant 7 : index
    %c0_19 = arith.constant 0 : index
    %c0_20 = arith.constant 0 : index
    %71 = vector.load %arg6[%c7, %c0_19, %c0_20] : memref<9x1x512xf32, #tpu.memory_space<vmem>>, vector<1x1x512xf32>
    %72 = vector.shape_cast %71 : vector<1x1x512xf32> to vector<1x512xf32>
    %73 = vector.broadcast %72 : vector<1x512xf32> to vector<2x512xf32>
    %74 = arith.mulf %70, %73 : vector<2x512xf32>
    %75 = arith.truncf %74 : vector<2x512xf32> to vector<2x512xbf16>
    %c495_i32 = arith.constant 495 : i32
    %76 = tpu.dynamic_rotate %32 by %c495_i32 dim 1 : vector<2x512xf32>, i32 -> vector<2x512xf32>
    %c8 = arith.constant 8 : index
    %c0_21 = arith.constant 0 : index
    %c0_22 = arith.constant 0 : index
    %77 = vector.load %arg6[%c8, %c0_21, %c0_22] : memref<9x1x512xf32, #tpu.memory_space<vmem>>, vector<1x1x512xf32>
    %78 = vector.shape_cast %77 : vector<1x1x512xf32> to vector<1x512xf32>
    %79 = vector.broadcast %78 : vector<1x512xf32> to vector<2x512xf32>
    %80 = arith.mulf %76, %79 : vector<2x512xf32>
    %81 = arith.truncf %80 : vector<2x512xf32> to vector<2x512xbf16>
    %82 = tpu.concatenate %38, %44, %50, %56, %57, %63, %69, %75, %81 in 0 : vector<2x512xbf16>, vector<2x512xbf16>, vector<2x512xbf16>, vector<2x512xbf16>, vector<2x512xbf16>, vector<2x512xbf16>, vector<2x512xbf16>, vector<2x512xbf16>, vector<2x512xbf16> -> vector<18x512xbf16>
    %c0_23 = arith.constant 0 : index
    %c0_24 = arith.constant 0 : index
    %83 = vector.load %arg4[%c0_23, %c0_24] : memref<4x18xbf16, #tpu.memory_space<vmem>>, vector<4x18xbf16>
    %cst_25 = arith.constant dense<0.000000e+00> : vector<4x512xf32>
    %84 = tpu.matmul %83, %82, %cst_25 {dimension_numbers = #tpu.dot_dimension_numbers<[1], [0], [0], [1], [0, 0, 1, 1], [], []>} : vector<4x18xbf16>, vector<18x512xbf16>, vector<4x512xf32> -> vector<4x512xf32>
    %c0_26 = arith.constant 0 : index
    %c0_27 = arith.constant 0 : index
    %85 = vector.load %arg5[%c0_26, %c0_27] : memref<4x1xf32, #tpu.memory_space<vmem>>, vector<4x1xf32>
    %86 = vector.broadcast %85 : vector<4x1xf32> to vector<4x512xf32>
    %87 = arith.addf %84, %86 : vector<4x512xf32>
    %cst_28 = arith.constant 0.000000e+00 : f32
    %88 = vector.broadcast %cst_28 : f32 to vector<4x512xf32>
    %89 = arith.cmpf ogt, %87, %88 : vector<4x512xf32>
    %cst_29 = arith.constant 1.000000e-01 : f32
    %90 = vector.broadcast %cst_29 : f32 to vector<4x512xf32>
    %91 = arith.mulf %90, %87 : vector<4x512xf32>
    %92 = arith.select %89, %87, %91 : vector<4x512xi1>, vector<4x512xf32>
    %93 = arith.addf %92, %0 : vector<4x512xf32>
    %c0_30 = arith.constant 0 : index
    %c0_31 = arith.constant 0 : index
    %94 = vector.load %arg7[%c0_30, %c0_31] : memref<4x512xf32, #tpu.memory_space<vmem>>, vector<4x512xf32>
    tpu.vector_store %arg7[%c0_30, %c0_31], %93 {strides = array<i32>} : memref<4x512xf32, #tpu.memory_space<vmem>>, vector<4x512xf32>,
    return
  }
  func.func @transform_0(%arg0: i32) -> (i32, i32) {
    %c0_i32 = arith.constant 0 : i32
    %c0_i32_0 = arith.constant 0 : i32
    return %c0_i32, %arg0 : i32, i32
  }
  func.func @transform_1(%arg0: i32) -> (i32, i32) {
    %c0_i32 = arith.constant 0 : i32
    %c0_i32_0 = arith.constant 0 : i32
    %c0_i32_1 = arith.constant 0 : i32
    return %c0_i32, %c0_i32_0 : i32, i32
  }
  func.func @transform_2(%arg0: i32) -> (i32, i32) {
    %c0_i32 = arith.constant 0 : i32
    %c0_i32_0 = arith.constant 0 : i32
    %c0_i32_1 = arith.constant 0 : i32
    return %c0_i32, %c0_i32_0 : i32, i32
  }
  func.func @transform_3(%arg0: i32) -> (i32, i32) {
    %c0_i32 = arith.constant 0 : i32
    %c0_i32_0 = arith.constant 0 : i32
    %c0_i32_1 = arith.constant 0 : i32
    return %c0_i32, %c0_i32_0 : i32, i32
  }
  func.func @transform_4(%arg0: i32) -> (i32, i32) {
    %c0_i32 = arith.constant 0 : i32
    %c0_i32_0 = arith.constant 0 : i32
    %c0_i32_1 = arith.constant 0 : i32
    return %c0_i32, %c0_i32_0 : i32, i32
  }
  func.func @transform_5(%arg0: i32) -> (i32, i32, i32) {
    %c0_i32 = arith.constant 0 : i32
    %c0_i32_0 = arith.constant 0 : i32
    %c0_i32_1 = arith.constant 0 : i32
    %c0_i32_2 = arith.constant 0 : i32
    return %c0_i32, %c0_i32_0, %c0_i32_1 : i32, i32, i32
  }
  func.func @transform_6(%arg0: i32) -> (i32, i32) {
    %c0_i32 = arith.constant 0 : i32
    %c0_i32_0 = arith.constant 0 : i32
    return %c0_i32, %arg0 : i32, i32
  }
}

</mosaic_0001>

<llo_original>
// kernel: tpu_custom_call.1
$region0: #{tpu_custom_call.1}
  #allocation0 [shape = 'u32[]', space=smem, size = 0x4, offset = 0x4, fixed_abs, tag = 'smem constant byte address 0x4 - core index']
  #allocation1 [shape = 'u32[144,128]{1,0:T(1,128)}', space=vmem, size = 0x12000, scoped, tag = 'internal scratch']
  %s0 = inlined_call_operand.hbm [shape: f32[4,512], index: 0, kind: input, shape index: {}]
  %s1 = inlined_call_operand.vmem [shape: f32[2,4], index: 1, kind: input, shape index: {}]
  %s2 = inlined_call_operand.vmem [shape: f32[2,1], index: 2, kind: input, shape index: {}]
  %s3 = inlined_call_operand.vmem [shape: bf16[4,18], index: 3, kind: input, shape index: {}]
  %s4 = inlined_call_operand.vmem [shape: f32[4,1], index: 4, kind: input, shape index: {}]
  %s5 = inlined_call_operand.hbm [shape: f32[9,1,512], index: 5, kind: input, shape index: {}]
  %s6 = inlined_call_operand.hbm [shape: f32[4,512], index: 6, kind: output, shape index: {}]
  %s7 = sld [smem:[#allocation0]]
  $region42: #{tpu_custom_call.1} parent=0
    _
  %s9 = ssub.s32 1, %s7
  %s10 = scalar_select 0, %s9, %s7
  $region1: #{tpu_custom_call.1} parent=0
    #allocation2 [shape = 'u8[8192]{0}', space=vmem, size = 0x2000, scoped, tag = 'input window, operand 0, single buffered']
    #allocation3 [shape = 's32[1]{0}', space=sflag, size = 0x4, scoped, tag = 'scoped memory for tpu_custom_call.1']
    #allocation4 [shape = 's32[1]{0}', space=sflag, size = 0x4, scoped, tag = 'scoped memory for tpu_custom_call.1']
    #allocation5 [shape = 'u8[18432]{0}', space=vmem, size = 0x4800, scoped, tag = 'input window, operand 5, single buffered']
    #allocation6 [shape = 's32[1]{0}', space=sflag, size = 0x4, scoped, tag = 'scoped memory for tpu_custom_call.1']
    #allocation7 [shape = 'u8[8192]{0}', space=vmem, size = 0x2000, scoped, tag = 'output window, operand 0, single buffered']
    %11 = vsyncpa [#allocation3], 0
    %12 = vsyncpa [#allocation6], 0
    %13 = vsyncpa [#allocation4], 0
    // Predicated region
    $region2: #{tpu_custom_call.1} parent=1 // pred_check
      _
    $region3: #{tpu_custom_call.1} parent=1 // pred_check_branch
      %15 = sbr.rel (0) target = $region5
    $region4: #{tpu_custom_call.1} parent=1 // pred_region
      %s17 = ssub.s32 256, 256
      %18 = vsyncadd [#allocation3], %s17
      %s20 = sshll.u32 [#allocation2], 4
      %s21 = int_to_ptr.vmem [resolvable:$true] %s20
      %23 = dma.hbm_to_vmem [thread:$0]  %s0, 256, %s21, [#allocation3]
    $region5: #{tpu_custom_call.1} parent=1 // pred_fallthru
      _
    // Predicated region
    $region6: #{tpu_custom_call.1} parent=1 // pred_check
      _
    $region7: #{tpu_custom_call.1} parent=1 // pred_check_branch
      %25 = sbr.rel (0) target = $region9
    $region8: #{tpu_custom_call.1} parent=1 // pred_region
      _
    $region9: #{tpu_custom_call.1} parent=1 // pred_fallthru
      _
    // Predicated region
    $region10: #{tpu_custom_call.1} parent=1 // pred_check
      _
    $region11: #{tpu_custom_call.1} parent=1 // pred_check_branch
      %27 = sbr.rel (0) target = $region13
    $region12: #{tpu_custom_call.1} parent=1 // pred_region
      _
    $region13: #{tpu_custom_call.1} parent=1 // pred_fallthru
      _
    // Predicated region
    $region14: #{tpu_custom_call.1} parent=1 // pred_check
      _
    $region15: #{tpu_custom_call.1} parent=1 // pred_check_branch
      %29 = sbr.rel (0) target = $region17
    $region16: #{tpu_custom_call.1} parent=1 // pred_region
      _
    $region17: #{tpu_custom_call.1} parent=1 // pred_fallthru
      _
    // Predicated region
    $region18: #{tpu_custom_call.1} parent=1 // pred_check
      _
    $region19: #{tpu_custom_call.1} parent=1 // pred_check_branch
      %31 = sbr.rel (0) target = $region21
    $region20: #{tpu_custom_call.1} parent=1 // pred_region
      _
    $region21: #{tpu_custom_call.1} parent=1 // pred_fallthru
      _
    // Predicated region
    $region22: #{tpu_custom_call.1} parent=1 // pred_check
      _
    $region23: #{tpu_custom_call.1} parent=1 // pred_check_branch
      %33 = sbr.rel (0) target = $region25
    $region24: #{tpu_custom_call.1} parent=1 // pred_region
      %s35 = ssub.s32 576, 576
      %36 = vsyncadd [#allocation6], %s35
      %s37 = sshll.u32 [#allocation5], 4
      %s38 = int_to_ptr.vmem [resolvable:$true] %s37
      %43 = dma.hbm_to_vmem [thread:$0]  %s5, 576, %s38, [#allocation6], 64, 64, 4
    $region25: #{tpu_custom_call.1} parent=1 // pred_fallthru
      _
    // Predicated region
    $region26: #{tpu_custom_call.1} parent=1 // pred_check
      _
    $region27: #{tpu_custom_call.1} parent=1 // pred_check_branch
      %45 = sbr.rel (0) target = $region29
    $region28: #{tpu_custom_call.1} parent=1 // pred_region
      %46 = dma.done [#allocation3], 256
    $region29: #{tpu_custom_call.1} parent=1 // pred_fallthru
      _
    // Predicated region
    $region30: #{tpu_custom_call.1} parent=1 // pred_check
      _
    $region31: #{tpu_custom_call.1} parent=1 // pred_check_branch
      %48 = sbr.rel (0) target = $region33
    $region32: #{tpu_custom_call.1} parent=1 // pred_region
      %49 = dma.done [#allocation6], 576
    $region33: #{tpu_custom_call.1} parent=1 // pred_fallthru
      _
    %v51 = vld [vmem:[#allocation2] sm:$0xff]
    %v52 = vld [vmem:[#allocation2 + $0x8] sm:$0xff]
    %v53 = vld [vmem:[%s1] sm:$0x3]
    %55 = vset.pattern.permute.xlu0 0
    %56 = vperm.xlu0 %55, %v53
    %v57 = vpop.permute.xlu0 %56
    %v61 = vlaneseq
    %v62 = vshrl.u32 %v61, 7
    %v63 = vsub.s32 0, %v62
    %v64 = vrot.slane %v51, %v63
    %v65 = vlaneseq
    %v66 = vshrl.u32 %v65, 7
    %v67 = vsub.s32 4, %v66
    %v68 = vrot.slane %v51, %v67
    %v69 = vlaneseq
    %v70 = vshrl.u32 %v69, 7
    %v71 = vsub.s32 0, %v70
    %v72 = vrot.slane %v52, %v71
    %v73 = vlaneseq
    %v74 = vshrl.u32 %v73, 7
    %v75 = vsub.s32 4, %v74
    %v76 = vrot.slane %v52, %v75
    %v81 = vlaneseq
    %v82 = vshrl.u32 %v81, 7
    %v83 = vsub.s32 0, %v82
    %v84 = vrot.slane %v64, %v83
    %v85 = vlaneseq
    %v86 = vshrl.u32 %v85, 7
    %v87 = vsub.s32 0, %v86
    %v88 = vrot.slane %v68, %v87
    %v89 = vlaneseq
    %v90 = vshrl.u32 %v89, 7
    %v91 = vsub.s32 0, %v90
    %v92 = vrot.slane %v72, %v91
    %v93 = vlaneseq
    %v94 = vshrl.u32 %v93, 7
    %v95 = vsub.s32 0, %v94
    %v96 = vrot.slane %v76, %v95
    %v97 = vmul.f32 %v57, %v84
    %v98 = vmul.f32 %v57, %v88
    %v99 = vmul.f32 %v57, %v92
    %v100 = vmul.f32 %v57, %v96
    %v101 = vld [vmem:[%s2] sm:$0x3]
    %103 = vset.pattern.permute.xlu0 0
    %104 = vperm.xlu0 %103, %v101
    %v105 = vpop.permute.xlu0 %104
    %v107 = vadd.f32 %v97, %v105
    %v108 = vadd.f32 %v98, %v105
    %v109 = vadd.f32 %v99, %v105
    %v110 = vadd.f32 %v100, %v105
    %111 = vset.pattern.permute.xlu0 1
    %112 = vperm.xlu0 %111, %v53
    %v113 = vpop.permute.xlu0 %112
    %v115 = vlaneseq
    %v116 = vshrl.u32 %v115, 7
    %v117 = vsub.s32 1, %v116
    %v118 = vrot.slane %v51, %v117
    %v119 = vlaneseq
    %v120 = vshrl.u32 %v119, 7
    %v121 = vsub.s32 5, %v120
    %v122 = vrot.slane %v51, %v121
    %v123 = vlaneseq
    %v124 = vshrl.u32 %v123, 7
    %v125 = vsub.s32 1, %v124
    %v126 = vrot.slane %v52, %v125
    %v127 = vlaneseq
    %v128 = vshrl.u32 %v127, 7
    %v129 = vsub.s32 5, %v128
    %v130 = vrot.slane %v52, %v129
    %v135 = vlaneseq
    %v136 = vshrl.u32 %v135, 7
    %v137 = vsub.s32 1, %v136
    %v138 = vrot.slane %v118, %v137
    %v139 = vlaneseq
    %v140 = vshrl.u32 %v139, 7
    %v141 = vsub.s32 1, %v140
    %v142 = vrot.slane %v122, %v141
    %v143 = vlaneseq
    %v144 = vshrl.u32 %v143, 7
    %v145 = vsub.s32 1, %v144
    %v146 = vrot.slane %v126, %v145
    %v147 = vlaneseq
    %v148 = vshrl.u32 %v147, 7
    %v149 = vsub.s32 1, %v148
    %v150 = vrot.slane %v130, %v149
    %v151 = vmul.f32 %v113, %v138
    %v152 = vmul.f32 %v113, %v142
    %v153 = vmul.f32 %v113, %v146
    %v154 = vmul.f32 %v113, %v150
    %v155 = vadd.f32 %v107, %v151
    %v156 = vadd.f32 %v108, %v152
    %v157 = vadd.f32 %v109, %v153
    %v158 = vadd.f32 %v110, %v154
    %159 = vset.pattern.permute.xlu0 2
    %160 = vperm.xlu0 %159, %v53
    %v161 = vpop.permute.xlu0 %160
    %v163 = vlaneseq
    %v164 = vshrl.u32 %v163, 7
    %v165 = vsub.s32 2, %v164
    %v166 = vrot.slane %v51, %v165
    %v167 = vlaneseq
    %v168 = vshrl.u32 %v167, 7
    %v169 = vsub.s32 6, %v168
    %v170 = vrot.slane %v51, %v169
    %v171 = vlaneseq
    %v172 = vshrl.u32 %v171, 7
    %v173 = vsub.s32 2, %v172
    %v174 = vrot.slane %v52, %v173
    %v175 = vlaneseq
    %v176 = vshrl.u32 %v175, 7
    %v177 = vsub.s32 6, %v176
    %v178 = vrot.slane %v52, %v177
    %v183 = vlaneseq
    %v184 = vshrl.u32 %v183, 7
    %v185 = vsub.s32 2, %v184
    %v186 = vrot.slane %v166, %v185
    %v187 = vlaneseq
    %v188 = vshrl.u32 %v187, 7
    %v189 = vsub.s32 2, %v188
    %v190 = vrot.slane %v170, %v189
    %v191 = vlaneseq
    %v192 = vshrl.u32 %v191, 7
    %v193 = vsub.s32 2, %v192
    %v194 = vrot.slane %v174, %v193
    %v195 = vlaneseq
    %v196 = vshrl.u32 %v195, 7
    %v197 = vsub.s32 2, %v196
    %v198 = vrot.slane %v178, %v197
    %v199 = vmul.f32 %v161, %v186
    %v200 = vmul.f32 %v161, %v190
    %v201 = vmul.f32 %v161, %v194
    %v202 = vmul.f32 %v161, %v198
    %v203 = vadd.f32 %v155, %v199
    %v204 = vadd.f32 %v156, %v200
    %v205 = vadd.f32 %v157, %v201
    %v206 = vadd.f32 %v158, %v202
    %207 = vset.pattern.permute.xlu0 3
    %208 = vperm.xlu0 %207, %v53
    %v209 = vpop.permute.xlu0 %208
    %v211 = vlaneseq
    %v212 = vshrl.u32 %v211, 7
    %v213 = vsub.s32 3, %v212
    %v214 = vrot.slane %v51, %v213
    %v215 = vlaneseq
    %v216 = vshrl.u32 %v215, 7
    %v217 = vsub.s32 7, %v216
    %v218 = vrot.slane %v51, %v217
    %v219 = vlaneseq
    %v220 = vshrl.u32 %v219, 7
    %v221 = vsub.s32 3, %v220
    %v222 = vrot.slane %v52, %v221
    %v223 = vlaneseq
    %v224 = vshrl.u32 %v223, 7
    %v225 = vsub.s32 7, %v224
    %v226 = vrot.slane %v52, %v225
    %v231 = vlaneseq
    %v232 = vshrl.u32 %v231, 7
    %v233 = vsub.s32 3, %v232
    %v234 = vrot.slane %v214, %v233
    %v235 = vlaneseq
    %v236 = vshrl.u32 %v235, 7
    %v237 = vsub.s32 3, %v236
    %v238 = vrot.slane %v218, %v237
    %v239 = vlaneseq
    %v240 = vshrl.u32 %v239, 7
    %v241 = vsub.s32 3, %v240
    %v242 = vrot.slane %v222, %v241
    %v243 = vlaneseq
    %v244 = vshrl.u32 %v243, 7
    %v245 = vsub.s32 3, %v244
    %v246 = vrot.slane %v226, %v245
    %v247 = vmul.f32 %v209, %v234
    %v248 = vmul.f32 %v209, %v238
    %v249 = vmul.f32 %v209, %v242
    %v250 = vmul.f32 %v209, %v246
    %v251 = vadd.f32 %v203, %v247
    %v252 = vadd.f32 %v204, %v248
    %v253 = vadd.f32 %v205, %v249
    %v254 = vadd.f32 %v206, %v250
    %vm255 = vcmp.gt.f32.partialorder %v251, 0.0
    %vm256 = vcmp.gt.f32.partialorder %v252, 0.0
    %vm257 = vcmp.gt.f32.partialorder %v253, 0.0
    %vm258 = vcmp.gt.f32.partialorder %v254, 0.0
    %v259 = vmul.f32 %v251, 0.1
    %v260 = vmul.f32 %v252, 0.1
    %v261 = vmul.f32 %v253, 0.1
    %v262 = vmul.f32 %v254, 0.1
    %v263 = vsel %vm255, %v251, %v259
    %v264 = vsel %vm256, %v252, %v260
    %v265 = vsel %vm257, %v253, %v261
    %v266 = vsel %vm258, %v254, %v262
    %267 = vrot.lane.b32.xlu0 %v263, 17
    %v268 = vpop.permute.xlu0 %267
    %269 = vrot.lane.b32.xlu0 %v264, 17
    %v270 = vpop.permute.xlu0 %269
    %271 = vrot.lane.b32.xlu0 %v265, 17
    %v272 = vpop.permute.xlu0 %271
    %273 = vrot.lane.b32.xlu0 %v266, 17
    %v274 = vpop.permute.xlu0 %273
    %v275 = vlaneseq
    %v276 = vand.u32 %v275, 127
    %vm277 = vcmp.lt.s32.totalorder %v276, 17
    %v278 = vsel %vm277, %v272, %v274
    %v279 = vsel %vm277, %v270, %v272
    %v280 = vsel %vm277, %v268, %v270
    %v281 = vsel %vm277, %v274, %v268
    %v282 = vld [vmem:[#allocation5] sm:$0xf]
    %v284 = vlaneseq
    %v285 = vshrl.u32 %v284, 7
    %v286 = vsub.s32 0, %v285
    %v287 = vrot.slane %v282, %v286
    %v288 = vlaneseq
    %v289 = vshrl.u32 %v288, 7
    %v290 = vsub.s32 1, %v289
    %v291 = vrot.slane %v282, %v290
    %v292 = vlaneseq
    %v293 = vshrl.u32 %v292, 7
    %v294 = vsub.s32 2, %v293
    %v295 = vrot.slane %v282, %v294
    %v296 = vlaneseq
    %v297 = vshrl.u32 %v296, 7
    %v298 = vsub.s32 3, %v297
    %v299 = vrot.slane %v282, %v298
    %v304 = vmul.f32 %v281, %v287
    %v305 = vmul.f32 %v280, %v291
    %v306 = vmul.f32 %v279, %v295
    %v307 = vmul.f32 %v278, %v299
    %v308 = vpack.c.bf16 %v304, %v304
    %v309 = vpack.c.bf16 %v305, %v305
    %v310 = vpack.c.bf16 %v306, %v306
    %v311 = vpack.c.bf16 %v307, %v307
    %312 = vrot.lane.b32.xlu0 %v263, 16
    %v313 = vpop.permute.xlu0 %312
    %314 = vrot.lane.b32.xlu0 %v264, 16
    %v315 = vpop.permute.xlu0 %314
    %316 = vrot.lane.b32.xlu0 %v265, 16
    %v317 = vpop.permute.xlu0 %316
    %318 = vrot.lane.b32.xlu0 %v266, 16
    %v319 = vpop.permute.xlu0 %318
    %vm320 = vcmp.lt.s32.totalorder %v276, 16
    %v321 = vsel %vm320, %v317, %v319
    %v322 = vsel %vm320, %v315, %v317
    %v323 = vsel %vm320, %v313, %v315
    %v324 = vsel %vm320, %v319, %v313
    %s325 = scalar_lea.vmem [#allocation5], 4
    %v326 = vld [vmem:[%s325] sm:$0xf]
    %v328 = vlaneseq
    %v329 = vshrl.u32 %v328, 7
    %v330 = vsub.s32 0, %v329
    %v331 = vrot.slane %v326, %v330
    %v332 = vlaneseq
    %v333 = vshrl.u32 %v332, 7
    %v334 = vsub.s32 1, %v333
    %v335 = vrot.slane %v326, %v334
    %v336 = vlaneseq
    %v337 = vshrl.u32 %v336, 7
    %v338 = vsub.s32 2, %v337
    %v339 = vrot.slane %v326, %v338
    %v340 = vlaneseq
    %v341 = vshrl.u32 %v340, 7
    %v342 = vsub.s32 3, %v341
    %v343 = vrot.slane %v326, %v342
    %v348 = vmul.f32 %v324, %v331
    %v349 = vmul.f32 %v323, %v335
    %v350 = vmul.f32 %v322, %v339
    %v351 = vmul.f32 %v321, %v343
    %v352 = vpack.c.bf16 %v348, %v348
    %v353 = vpack.c.bf16 %v349, %v349
    %v354 = vpack.c.bf16 %v350, %v350
    %v355 = vpack.c.bf16 %v351, %v351
    %356 = vrot.lane.b32.xlu0 %v263, 15
    %v357 = vpop.permute.xlu0 %356
    %358 = vrot.lane.b32.xlu0 %v264, 15
    %v359 = vpop.permute.xlu0 %358
    %360 = vrot.lane.b32.xlu0 %v265, 15
    %v361 = vpop.permute.xlu0 %360
    %362 = vrot.lane.b32.xlu0 %v266, 15
    %v363 = vpop.permute.xlu0 %362
    %vm364 = vcmp.lt.s32.totalorder %v276, 15
    %v365 = vsel %vm364, %v361, %v363
    %v366 = vsel %vm364, %v359, %v361
    %v367 = vsel %vm364, %v357, %v359
    %v368 = vsel %vm364, %v363, %v357
    %s369 = scalar_lea.vmem [#allocation5], 8
    %v370 = vld [vmem:[%s369] sm:$0xf]
    %v372 = vlaneseq
    %v373 = vshrl.u32 %v372, 7
    %v374 = vsub.s32 0, %v373
    %v375 = vrot.slane %v370, %v374
    %v376 = vlaneseq
    %v377 = vshrl.u32 %v376, 7
    %v378 = vsub.s32 1, %v377
    %v379 = vrot.slane %v370, %v378
    %v380 = vlaneseq
    %v381 = vshrl.u32 %v380, 7
    %v382 = vsub.s32 2, %v381
    %v383 = vrot.slane %v370, %v382
    %v384 = vlaneseq
    %v385 = vshrl.u32 %v384, 7
    %v386 = vsub.s32 3, %v385
    %v387 = vrot.slane %v370, %v386
    %v392 = vmul.f32 %v368, %v375
    %v393 = vmul.f32 %v367, %v379
    %v394 = vmul.f32 %v366, %v383
    %v395 = vmul.f32 %v365, %v387
    %v396 = vpack.c.bf16 %v392, %v392
    %v397 = vpack.c.bf16 %v393, %v393
    %v398 = vpack.c.bf16 %v394, %v394
    %v399 = vpack.c.bf16 %v395, %v395
    %400 = vrot.lane.b32.xlu0 %v263, 1
    %v401 = vpop.permute.xlu0 %400
    %402 = vrot.lane.b32.xlu0 %v264, 1
    %v403 = vpop.permute.xlu0 %402
    %404 = vrot.lane.b32.xlu0 %v265, 1
    %v405 = vpop.permute.xlu0 %404
    %406 = vrot.lane.b32.xlu0 %v266, 1
    %v407 = vpop.permute.xlu0 %406
    %vm408 = vcmp.lt.s32.totalorder %v276, 1
    %v409 = vsel %vm408, %v405, %v407
    %v410 = vsel %vm408, %v403, %v405
    %v411 = vsel %vm408, %v401, %v403
    %v412 = vsel %vm408, %v407, %v401
    %s413 = scalar_lea.vmem [#allocation5], 12
    %v414 = vld [vmem:[%s413] sm:$0xf]
    %v416 = vlaneseq
    %v417 = vshrl.u32 %v416, 7
    %v418 = vsub.s32 0, %v417
    %v419 = vrot.slane %v414, %v418
    %v420 = vlaneseq
    %v421 = vshrl.u32 %v420, 7
    %v422 = vsub.s32 1, %v421
    %v423 = vrot.slane %v414, %v422
    %v424 = vlaneseq
    %v425 = vshrl.u32 %v424, 7
    %v426 = vsub.s32 2, %v425
    %v427 = vrot.slane %v414, %v426
    %v428 = vlaneseq
    %v429 = vshrl.u32 %v428, 7
    %v430 = vsub.s32 3, %v429
    %v431 = vrot.slane %v414, %v430
    %v436 = vmul.f32 %v412, %v419
    %v437 = vmul.f32 %v411, %v423
    %v438 = vmul.f32 %v410, %v427
    %v439 = vmul.f32 %v409, %v431
    %v440 = vpack.c.bf16 %v436, %v436
    %v441 = vpack.c.bf16 %v437, %v437
    %v442 = vpack.c.bf16 %v438, %v438
    %v443 = vpack.c.bf16 %v439, %v439
    %v444 = vpack.c.bf16 %v263, %v263
    %v445 = vpack.c.bf16 %v264, %v264
    %v446 = vpack.c.bf16 %v265, %v265
    %v447 = vpack.c.bf16 %v266, %v266
    %448 = vrot.lane.b32.xlu0 %v263, 127
    %v449 = vpop.permute.xlu0 %448
    %450 = vrot.lane.b32.xlu0 %v264, 127
    %v451 = vpop.permute.xlu0 %450
    %452 = vrot.lane.b32.xlu0 %v265, 127
    %v453 = vpop.permute.xlu0 %452
    %454 = vrot.lane.b32.xlu0 %v266, 127
    %v455 = vpop.permute.xlu0 %454
    %vm456 = vcmp.lt.s32.totalorder %v276, 127
    %v457 = vsel %vm456, %v453, %v455
    %v458 = vsel %vm456, %v451, %v453
    %v459 = vsel %vm456, %v449, %v451
    %v460 = vsel %vm456, %v455, %v449
    %s461 = scalar_lea.vmem [#allocation5], 20
    %v462 = vld [vmem:[%s461] sm:$0xf]
    %v464 = vlaneseq
    %v465 = vshrl.u32 %v464, 7
    %v466 = vsub.s32 0, %v465
    %v467 = vrot.slane %v462, %v466
    %v468 = vlaneseq
    %v469 = vshrl.u32 %v468, 7
    %v470 = vsub.s32 1, %v469
    %v471 = vrot.slane %v462, %v470
    %v472 = vlaneseq
    %v473 = vshrl.u32 %v472, 7
    %v474 = vsub.s32 2, %v473
    %v475 = vrot.slane %v462, %v474
    %v476 = vlaneseq
    %v477 = vshrl.u32 %v476, 7
    %v478 = vsub.s32 3, %v477
    %v479 = vrot.slane %v462, %v478
    %v484 = vmul.f32 %v459, %v467
    %v485 = vmul.f32 %v458, %v471
    %v486 = vmul.f32 %v457, %v475
    %v487 = vmul.f32 %v460, %v479
    %v488 = vpack.c.bf16 %v484, %v484
    %v489 = vpack.c.bf16 %v485, %v485
    %v490 = vpack.c.bf16 %v486, %v486
    %v491 = vpack.c.bf16 %v487, %v487
    %492 = vrot.lane.b32.xlu0 %v263, 113
    %v493 = vpop.permute.xlu0 %492
    %494 = vrot.lane.b32.xlu0 %v264, 113
    %v495 = vpop.permute.xlu0 %494
    %496 = vrot.lane.b32.xlu0 %v265, 113
    %v497 = vpop.permute.xlu0 %496
    %498 = vrot.lane.b32.xlu0 %v266, 113
    %v499 = vpop.permute.xlu0 %498
    %vm500 = vcmp.lt.s32.totalorder %v276, 113
    %v501 = vsel %vm500, %v497, %v499
    %v502 = vsel %vm500, %v495, %v497
    %v503 = vsel %vm500, %v493, %v495
    %v504 = vsel %vm500, %v499, %v493
    %s505 = scalar_lea.vmem [#allocation5], 24
    %v506 = vld [vmem:[%s505] sm:$0xf]
    %v508 = vlaneseq
    %v509 = vshrl.u32 %v508, 7
    %v510 = vsub.s32 0, %v509
    %v511 = vrot.slane %v506, %v510
    %v512 = vlaneseq
    %v513 = vshrl.u32 %v512, 7
    %v514 = vsub.s32 1, %v513
    %v515 = vrot.slane %v506, %v514
    %v516 = vlaneseq
    %v517 = vshrl.u32 %v516, 7
    %v518 = vsub.s32 2, %v517
    %v519 = vrot.slane %v506, %v518
    %v520 = vlaneseq
    %v521 = vshrl.u32 %v520, 7
    %v522 = vsub.s32 3, %v521
    %v523 = vrot.slane %v506, %v522
    %v528 = vmul.f32 %v503, %v511
    %v529 = vmul.f32 %v502, %v515
    %v530 = vmul.f32 %v501, %v519
    %v531 = vmul.f32 %v504, %v523
    %v532 = vpack.c.bf16 %v528, %v528
    %v533 = vpack.c.bf16 %v529, %v529
    %v534 = vpack.c.bf16 %v530, %v530
    %v535 = vpack.c.bf16 %v531, %v531
    %536 = vrot.lane.b32.xlu0 %v263, 112
    %v537 = vpop.permute.xlu0 %536
    %538 = vrot.lane.b32.xlu0 %v264, 112
    %v539 = vpop.permute.xlu0 %538
    %540 = vrot.lane.b32.xlu0 %v265, 112
    %v541 = vpop.permute.xlu0 %540
    %542 = vrot.lane.b32.xlu0 %v266, 112
    %v543 = vpop.permute.xlu0 %542
    %vm544 = vcmp.lt.s32.totalorder %v276, 112
    %v545 = vsel %vm544, %v541, %v543
    %v546 = vsel %vm544, %v539, %v541
    %v547 = vsel %vm544, %v537, %v539
    %v548 = vsel %vm544, %v543, %v537
    %s549 = scalar_lea.vmem [#allocation5], 28
    %v550 = vld [vmem:[%s549] sm:$0xf]
    %v552 = vlaneseq
    %v553 = vshrl.u32 %v552, 7
    %v554 = vsub.s32 0, %v553
    %v555 = vrot.slane %v550, %v554
    %v556 = vlaneseq
    %v557 = vshrl.u32 %v556, 7
    %v558 = vsub.s32 1, %v557
    %v559 = vrot.slane %v550, %v558
    %v560 = vlaneseq
    %v561 = vshrl.u32 %v560, 7
    %v562 = vsub.s32 2, %v561
    %v563 = vrot.slane %v550, %v562
    %v564 = vlaneseq
    %v565 = vshrl.u32 %v564, 7
    %v566 = vsub.s32 3, %v565
    %v567 = vrot.slane %v550, %v566
    %v572 = vmul.f32 %v547, %v555
    %v573 = vmul.f32 %v546, %v559
    %v574 = vmul.f32 %v545, %v563
    %v575 = vmul.f32 %v548, %v567
    %v576 = vpack.c.bf16 %v572, %v572
    %v577 = vpack.c.bf16 %v573, %v573
    %v578 = vpack.c.bf16 %v574, %v574
    %v579 = vpack.c.bf16 %v575, %v575
    %580 = vrot.lane.b32.xlu0 %v263, 111
    %v581 = vpop.permute.xlu0 %580
    %582 = vrot.lane.b32.xlu0 %v264, 111
    %v583 = vpop.permute.xlu0 %582
    %584 = vrot.lane.b32.xlu0 %v265, 111
    %v585 = vpop.permute.xlu0 %584
    %586 = vrot.lane.b32.xlu0 %v266, 111
    %v587 = vpop.permute.xlu0 %586
    %vm588 = vcmp.lt.s32.totalorder %v276, 111
    %v589 = vsel %vm588, %v585, %v587
    %v590 = vsel %vm588, %v583, %v585
    %v591 = vsel %vm588, %v581, %v583
    %v592 = vsel %vm588, %v587, %v581
    %s593 = scalar_lea.vmem [#allocation5], 32
    %v594 = vld [vmem:[%s593] sm:$0xf]
    %v596 = vlaneseq
    %v597 = vshrl.u32 %v596, 7
    %v598 = vsub.s32 0, %v597
    %v599 = vrot.slane %v594, %v598
    %v600 = vlaneseq
    %v601 = vshrl.u32 %v600, 7
    %v602 = vsub.s32 1, %v601
    %v603 = vrot.slane %v594, %v602
    %v604 = vlaneseq
    %v605 = vshrl.u32 %v604, 7
    %v606 = vsub.s32 2, %v605
    %v607 = vrot.slane %v594, %v606
    %v608 = vlaneseq
    %v609 = vshrl.u32 %v608, 7
    %v610 = vsub.s32 3, %v609
    %v611 = vrot.slane %v594, %v610
    %v616 = vmul.f32 %v591, %v599
    %v617 = vmul.f32 %v590, %v603
    %v618 = vmul.f32 %v589, %v607
    %v619 = vmul.f32 %v592, %v611
    %v620 = vpack.c.bf16 %v616, %v616
    %v621 = vpack.c.bf16 %v617, %v617
    %v622 = vpack.c.bf16 %v618, %v618
    %v623 = vpack.c.bf16 %v619, %v619
    %v628 = vrot.slane %v352, 7
    %v629 = vrot.slane %v353, 7
    %v630 = vrot.slane %v354, 7
    %v631 = vrot.slane %v355, 7
    %v636 = vrot.slane %v396, 6
    %v637 = vrot.slane %v397, 6
    %v638 = vrot.slane %v398, 6
    %v639 = vrot.slane %v399, 6
    %v644 = vrot.slane %v440, 5
    %v645 = vrot.slane %v441, 5
    %v646 = vrot.slane %v442, 5
    %v647 = vrot.slane %v443, 5
    %v652 = vrot.slane %v444, 4
    %v653 = vrot.slane %v445, 4
    %v654 = vrot.slane %v446, 4
    %v655 = vrot.slane %v447, 4
    %v660 = vrot.slane %v488, 3
    %v661 = vrot.slane %v489, 3
    %v662 = vrot.slane %v490, 3
    %v663 = vrot.slane %v491, 3
    %v668 = vrot.slane %v532, 2
    %v669 = vrot.slane %v533, 2
    %v670 = vrot.slane %v534, 2
    %v671 = vrot.slane %v535, 2
    %v676 = vrot.slane %v576, 1
    %v677 = vrot.slane %v577, 1
    %v678 = vrot.slane %v578, 1
    %v679 = vrot.slane %v579, 1
    %vm680 = vcmask 1040384
    %v683 = vsel %vm680, %v308, %v628
    %v686 = vsel %vm680, %v309, %v629
    %v689 = vsel %vm680, %v310, %v630
    %v692 = vsel %vm680, %v311, %v631
    %vm693 = vcmask 1041408
    %v695 = vsel %vm693, %v683, %v636
    %v697 = vsel %vm693, %v686, %v637
    %v699 = vsel %vm693, %v689, %v638
    %v701 = vsel %vm693, %v692, %v639
    %vm702 = vcmask 1042432
    %v704 = vsel %vm702, %v695, %v644
    %v706 = vsel %vm702, %v697, %v645
    %v708 = vsel %vm702, %v699, %v646
    %v710 = vsel %vm702, %v701, %v647
    %vm711 = vcmask 1043456
    %v713 = vsel %vm711, %v704, %v652
    %v715 = vsel %vm711, %v706, %v653
    %v717 = vsel %vm711, %v708, %v654
    %v719 = vsel %vm711, %v710, %v655
    %vm720 = vcmask 1044480
    %v722 = vsel %vm720, %v713, %v660
    %v724 = vsel %vm720, %v715, %v661
    %v726 = vsel %vm720, %v717, %v662
    %v728 = vsel %vm720, %v719, %v663
    %vm729 = vcmask 1045504
    %v731 = vsel %vm729, %v722, %v668
    %v733 = vsel %vm729, %v724, %v669
    %v735 = vsel %vm729, %v726, %v670
    %v737 = vsel %vm729, %v728, %v671
    %vm738 = vcmask 1046528
    %v740 = vsel %vm738, %v731, %v676
    %v743 = vsel %vm738, %v733, %v677
    %v746 = vsel %vm738, %v735, %v678
    %v749 = vsel %vm738, %v737, %v679
    %v751 = vld [vmem:[%s3] sm:$0x3]
    %v752 = vld [vmem:[%s4] sm:$0xf]
    %754 = vset.pattern.permute.xlu0 0
    %755 = vperm.xlu0 %754, %v752
    %v756 = vpop.permute.xlu0 %755
    %vm758 = vcmask 146432
    %v760 = vsel %vm758, %v751, 0
    %v763 = vsel %vm680, %v620, 0
    %v766 = vsel %vm680, %v621, 0
    %v769 = vsel %vm680, %v622, 0
    %v772 = vsel %vm680, %v623, 0
    %774 = vmatprep.subr.bf16.mxu0 %v743
    %775 = vmatpush1.bf16.msra.mxu0 %v740
    %776 = vmatprep.subr.bf16.mxu0 %v766
    %777 = vmatpush1.bf16.msra.mxu0 %v763
    %778 = vmatprep.subr.bf16.mxu0 0
    %779 = vmatpush1.bf16.msra.mxu0 0
    %780 = vmatprep.subr.bf16.mxu0 0
    %781 = vmatpush1.bf16.msra.mxu0 0
    %782 = vmatprep.subr.bf16.mxu0 0
    %783 = vmatpush1.bf16.msra.mxu0 0
    %784 = vmatprep.subr.bf16.mxu0 0
    %785 = vmatpush1.bf16.msra.mxu0 0
    %786 = vmatprep.subr.bf16.mxu0 0
    %787 = vmatpush1.bf16.msra.mxu0 0
    %788 = vmatprep.subr.bf16.mxu0 0
    %789 = vmatpush1.bf16.msra.mxu0 0
    %790 = vmatprep.subr.bf16.mxu0 0
    %791 = vmatpush1.bf16.msra.mxu0 0
    %792 = vmatprep.subr.bf16.mxu0 0
    %793 = vmatpush1.bf16.msra.mxu0 0
    %794 = vmatprep.subr.bf16.mxu0 0
    %795 = vmatpush1.bf16.msra.mxu0 0
    %796 = vmatprep.subr.bf16.mxu0 0
    %797 = vmatpush1.bf16.msra.mxu0 0
    %798 = vmatprep.subr.bf16.mxu0 0
    %799 = vmatpush1.bf16.msra.mxu0 0
    %800 = vmatprep.subr.bf16.mxu0 0
    %801 = vmatpush1.bf16.msra.mxu0 0
    %802 = vmatprep.subr.bf16.mxu0 0
    %803 = vmatpush1.bf16.msra.mxu0 0
    %804 = vmatprep.subr.bf16.mxu0 0
    %805 = vmatpush1.bf16.msra.mxu0 0
    %806 = vmatprep.mubr.bf16.mxu0 0
    %807 = vmatmul.mubr.bf16.gmra.mrb[0].mxu0 %v760
    %v808 = vpop.f32.mrb[0].mxu0
    %v809 = vadd.f32 %v756, %v808
    %v810 = vpop.f32.mrb[0].mxu0
    %v811 = vadd.f32 %v756, %v810
    %v812 = vpop.f32.mrb[0].mxu0
    %v813 = vpop.f32.mrb[0].mxu0
    %814 = vdwg.mxu0
    %815 = vmatprep.subr.bf16.mxu0 %v749
    %816 = vmatpush1.bf16.msra.mxu0 %v746
    %817 = vmatprep.subr.bf16.mxu0 %v772
    %818 = vmatpush1.bf16.msra.mxu0 %v769
    %819 = vmatprep.subr.bf16.mxu0 0
    %820 = vmatpush1.bf16.msra.mxu0 0
    %821 = vmatprep.subr.bf16.mxu0 0
    %822 = vmatpush1.bf16.msra.mxu0 0
    %823 = vmatprep.subr.bf16.mxu0 0
    %824 = vmatpush1.bf16.msra.mxu0 0
    %825 = vmatprep.subr.bf16.mxu0 0
    %826 = vmatpush1.bf16.msra.mxu0 0
    %827 = vmatprep.subr.bf16.mxu0 0
    %828 = vmatpush1.bf16.msra.mxu0 0
    %829 = vmatprep.subr.bf16.mxu0 0
    %830 = vmatpush1.bf16.msra.mxu0 0
    %831 = vmatprep.subr.bf16.mxu0 0
    %832 = vmatpush1.bf16.msra.mxu0 0
    %833 = vmatprep.subr.bf16.mxu0 0
    %834 = vmatpush1.bf16.msra.mxu0 0
    %835 = vmatprep.subr.bf16.mxu0 0
    %836 = vmatpush1.bf16.msra.mxu0 0
    %837 = vmatprep.subr.bf16.mxu0 0
    %838 = vmatpush1.bf16.msra.mxu0 0
    %839 = vmatprep.subr.bf16.mxu0 0
    %840 = vmatpush1.bf16.msra.mxu0 0
    %841 = vmatprep.subr.bf16.mxu0 0
    %842 = vmatpush1.bf16.msra.mxu0 0
    %843 = vmatprep.subr.bf16.mxu0 0
    %844 = vmatpush1.bf16.msra.mxu0 0
    %845 = vmatprep.subr.bf16.mxu0 0
    %846 = vmatpush1.bf16.msra.mxu0 0
    %847 = vmatprep.mubr.bf16.mxu0 0
    %848 = vmatmul.mubr.bf16.gmra.mrb[0].mxu0 %v760
    %v849 = vpop.f32.mrb[0].mxu0
    %v850 = vadd.f32 %v756, %v849
    %v851 = vpop.f32.mrb[0].mxu0
    %v852 = vadd.f32 %v756, %v851
    %v853 = vpop.f32.mrb[0].mxu0
    %v854 = vpop.f32.mrb[0].mxu0
    %855 = vdwg.mxu0
    %vm856 = vcmp.gt.f32.partialorder %v809, 0.0
    %vm857 = vcmp.gt.f32.partialorder %v811, 0.0
    %vm858 = vcmp.gt.f32.partialorder %v850, 0.0
    %vm859 = vcmp.gt.f32.partialorder %v852, 0.0
    %v860 = vmul.f32 %v809, 0.1
    %v861 = vmul.f32 %v811, 0.1
    %v862 = vmul.f32 %v850, 0.1
    %v863 = vmul.f32 %v852, 0.1
    %v864 = vsel %vm856, %v809, %v860
    %v865 = vsel %vm857, %v811, %v861
    %v866 = vsel %vm858, %v850, %v862
    %v867 = vsel %vm859, %v852, %v863
    %v868 = vcombine.high %v51, %v51
    %v869 = vcombine.high %v52, %v52
    %v872 = vadd.f32 %v864, %v51
    %v873 = vadd.f32 %v865, %v868
    %v874 = vadd.f32 %v866, %v52
    %v875 = vadd.f32 %v867, %v869
    %v880 = vcombine.low %v872, %v873
    %v881 = vcombine.low %v874, %v875
    %884 = vst [vmem:[#allocation7] sm:$0xff] %v880
    %885 = vst [vmem:[#allocation7 + $0x8] sm:$0xff] %v881
    // Predicated region
    $region34: #{tpu_custom_call.1} parent=1 // pred_check
      _
    $region35: #{tpu_custom_call.1} parent=1 // pred_check_branch
      %887 = sbr.rel (0) target = $region37
    $region36: #{tpu_custom_call.1} parent=1 // pred_region
      %s889 = ssub.s32 256, 256
      %890 = vsyncadd [#allocation4], %s889
      %s892 = sshll.u32 [#allocation7], 4
      %s893 = int_to_ptr.vmem [resolvable:$true] %s892
      %895 = dma.vmem_to_hbm [thread:$0]  %s893, 256, %s6, [#allocation4]
    $region37: #{tpu_custom_call.1} parent=1 // pred_fallthru
      _
    // Predicated region
    $region38: #{tpu_custom_call.1} parent=1 // pred_check
      _
    $region39: #{tpu_custom_call.1} parent=1 // pred_check_branch
      %897 = sbr.rel (0) target = $region41
    $region40: #{tpu_custom_call.1} parent=1 // pred_region
      %898 = dma.done [#allocation4], 256
    $region41: #{tpu_custom_call.1} parent=1 // pred_fallthru
      _
    %899 = vsyncpa [#allocation3], 1
    %900 = vsyncpa [#allocation6], 1
    %901 = vsyncpa [#allocation4], 1

</llo_original>
